<compile_context>
chip_gen: v7x
topology: tpu7x:2x2x1
jax: 0.10.0
libtpu: 0.0.40
codegen_flags: <defaults>
</compile_context>

<pallas_src>
import jax
import jax.numpy as jnp
from jax.experimental import pallas as pl
from jax.experimental.pallas import tpu as pltpu

LEAKY_SLOPE = 0.01  # PyTorch nn.LeakyReLU default negative_slope


def _leaky_relu(x):
    # max(x, slope*x): 2 VALU ops (mul+max) instead of cmp+mul+select.
    return jnp.maximum(x, LEAKY_SLOPE * x)


def _round_up(n, m):
    return ((n + m - 1) // m) * m


def _mlp_kernel(xT_ref, w1_ref, b1_ref, w2_ref, b2_ref, w3_ref, b3_ref,
                opt_min_ref, o_ref):
    """Batch-on-lanes fused MLP.

    xT_ref : (n_ipt, tile_b)  input tile, batch on the lane axis
    wN_ref : (out, in)        PyTorch-native layout (norm/scale pre-folded)
    bN_ref : (out, 1)         f32 column bias, broadcasts over lanes
    o_ref  : (n_opt, tile_b)  lane-dense f32 output tile
    """
    mm_dtype = w1_ref.dtype          # bf16 (fast path) or f32
    xT = xT_ref[...]

    # Linear 1 (input normalization folded into w1/b1) + LeakyReLU
    h1 = jnp.dot(w1_ref[...], xT, preferred_element_type=jnp.float32) + b1_ref[...]
    h1 = _leaky_relu(h1).astype(mm_dtype)

    # Linear 2 + Dropout + LeakyReLU
    # TODO(synk): nn.Dropout is identity in eval mode; training-mode mask/scale
    # is not implemented in this kernel.
    h2 = jnp.dot(w2_ref[...], h1, preferred_element_type=jnp.float32) + b2_ref[...]
    h2 = _leaky_relu(h2).astype(mm_dtype)

    # Linear 3 (output range folded into w3/b3)
    h3 = jnp.dot(w3_ref[...], h2, preferred_element_type=jnp.float32) + b3_ref[...]

    # clamp(min=0)*range + opt_min  ==  max(h3*range, 0) + opt_min  (range > 0),
    # with the range already baked into w3/b3.
    o_ref[...] = (jnp.maximum(h3, 0.0) + opt_min_ref[...]).astype(o_ref.dtype)


def _fold_params(params, use_bf16):
    """Fold normalization affines into the first/last Linear layers."""
    (ipt_min, ipt_max, w1, b1, w2, b2, w3, b3, opt_min, opt_max) = params
    f32 = jnp.float32
    w1, b1, w2, b2, w3, b3 = (a.astype(f32) for a in (w1, b1, w2, b2, w3, b3))
    ipt_min, ipt_max = ipt_min.astype(f32), ipt_max.astype(f32)
    opt_min, opt_max = opt_min.astype(f32), opt_max.astype(f32)

    # Input side: xn = (x - ipt_min) * inv_rng  ->  x @ (w1*inv).T + folded bias
    # NOTE: assumes ipt_max > ipt_min per feature (same requirement as the
    # original module's divide).
    inv_rng = 1.0 / (ipt_max - ipt_min)                 # (1, n_ipt)
    w1f = w1 * inv_rng                                  # scale in-feature cols
    b1f = b1 - jnp.squeeze((ipt_min * inv_rng) @ w1.T, 0)

    # Output side: max(h3,0)*rng + opt_min == max(h3*rng,0) + opt_min  (rng>0)
    opt_rng = opt_max - opt_min                         # (1, n_opt)
    w3f = w3 * opt_rng.T                                # scale out-feature rows
    b3f = b3 * jnp.squeeze(opt_rng, 0)

    mm_dtype = jnp.bfloat16 if use_bf16 else f32
    return (
        w1f.astype(mm_dtype), b1f.reshape(-1, 1),
        w2.astype(mm_dtype),  b2.reshape(-1, 1),
        w3f.astype(mm_dtype), b3f.reshape(-1, 1),
        opt_min.reshape(-1, 1),
        mm_dtype,
    )


def binomial_options_forward(x, params, *, tile_b=None, use_bf16=True):
    """Fused MLP forward.  x: [B, n_ipt] float32 -> [B, n_opt] float32."""
    B, n_ipt = x.shape
    (w1c, b1c, w2c, b2c, w3c, b3c, opt_min_col, mm_dtype) = _fold_params(
        params, use_bf16)
    h1 = w1c.shape[0]
    h2 = w2c.shape[0]
    n_opt = w3c.shape[0]
    assert w1c.shape[1] == n_ipt

    # Batch tile: multiple of 128 (batch sits on the lane axis).
    if tile_b is None:
        tile_b = min(512, _round_up(B, 128))
    assert tile_b % 128 == 0, "tile_b must be a multiple of 128"

    B_pad = _round_up(B, tile_b)
    grid = (B_pad // tile_b,)

    # Transpose once in the wrapper so batch is lane-major inside the kernel.
    xT = jnp.pad(x.astype(mm_dtype), ((0, B_pad - B), (0, 0))).T   # (n_ipt, B_pad)

    def const(shape):
        # Constant operands: same block every grid step (stay VMEM-resident).
        return pl.BlockSpec(shape, lambda i: (0, 0))

    oT = pl.pallas_call(
        _mlp_kernel,
        out_shape=jax.ShapeDtypeStruct((n_opt, B_pad), jnp.float32),
        grid=grid,
        in_specs=[
            pl.BlockSpec((n_ipt, tile_b), lambda i: (0, i)),   # xT tile
            const((h1, n_ipt)), const((h1, 1)),                # w1', b1'
            const((h2, h1)),    const((h2, 1)),                # w2,  b2
            const((n_opt, h2)), const((n_opt, 1)),             # w3', b3'
            const((n_opt, 1)),                                 # opt_min
        ],
        out_specs=pl.BlockSpec((n_opt, tile_b), lambda i: (0, i)),
        compiler_params=pltpu.CompilerParams(
            dimension_semantics=("parallel",)),
    )(xT, w1c, b1c, w2c, b2c, w3c, b3c, opt_min_col)

    return oT.T[:B]


def make_params(key, multiplier=4, hidden1_features=8, hidden2_features=8):
    """Deterministic synthetic parameters; weights in PyTorch (out, in) layout."""
    n_ipt = 5 * multiplier
    h1 = hidden1_features * multiplier
    h2 = hidden2_features * multiplier
    n_opt = 1 * multiplier

    ks = jax.random.split(key, 6)
    w1 = jax.random.uniform(ks[0], (h1, n_ipt), jnp.float32, -0.3, 0.3)
    b1 = jax.random.uniform(ks[1], (h1,), jnp.float32, -0.1, 0.1)
    w2 = jax.random.uniform(ks[2], (h2, h1), jnp.float32, -0.3, 0.3)
    b2 = jax.random.uniform(ks[3], (h2,), jnp.float32, -0.1, 0.1)
    w3 = jax.random.uniform(ks[4], (n_opt, h2), jnp.float32, -0.3, 0.3)
    b3 = jax.random.uniform(ks[5], (n_opt,), jnp.float32, -0.1, 0.1)

    # Normalization buffers (the real module fills them from training data);
    # finite min < max so the forward is numerically well defined.
    ipt_min = jnp.full((1, n_ipt), -1.0, jnp.float32)
    ipt_max = jnp.full((1, n_ipt), 2.0, jnp.float32)
    opt_min = jnp.full((1, n_opt), 0.5, jnp.float32)
    opt_max = jnp.full((1, n_opt), 3.0, jnp.float32)

    return (ipt_min, ipt_max, w1, b1, w2, b2, w3, b3, opt_min, opt_max)


def reference_forward(x, params):
    """Pure-JAX reference of the original module math (f32, high precision)."""
    (ipt_min, ipt_max, w1, b1, w2, b2, w3, b3, opt_min, opt_max) = params
    hp = jax.lax.Precision.HIGHEST
    xn = (x - ipt_min) / (ipt_max - ipt_min)
    a1 = _leaky_relu(jnp.dot(xn, w1.T, precision=hp) + b1)
    a2 = _leaky_relu(jnp.dot(a1, w2.T, precision=hp) + b2)   # Dropout = identity (eval)
    h3 = jnp.dot(a2, w3.T, precision=hp) + b3
    y = jnp.maximum(h3, 0.0)                                  # torch.clamp(min=0)
    return y * (opt_max - opt_min) + opt_min


if __name__ == "__main__":
    key = jax.random.PRNGKey(0)
    kx, kp = jax.random.split(key)

    multiplier = 4               # n_ipt = 20, h1 = h2 = 32, n_opt = 4
    params = make_params(kp, multiplier, hidden1_features=8, hidden2_features=8)

    batch = 1024                 # tile_b=128 -> grid of 8 "parallel" steps
    x = jax.random.uniform(kx, (batch, 5 * multiplier), jnp.float32, -1.0, 2.0)

    ref = reference_forward(x, params)

    # f32 matmul path: only the affine fold reassociation + MXU f32 pass
    # splitting differ from the reference.
    out_f32 = jax.block_until_ready(
        binomial_options_forward(x, params, tile_b=128, use_bf16=False))
    assert out_f32.shape == (batch, multiplier), out_f32.shape
    err32 = jnp.max(jnp.abs(out_f32 - ref))
    assert jnp.allclose(out_f32, ref, atol=2e-3, rtol=2e-3), (
        f"f32 path max abs err {err32}")

    # bf16 MXU fast path (default): looser tolerance for bf16 operand rounding.
    out_bf16 = jax.block_until_ready(
        binomial_options_forward(x, params, tile_b=128, use_bf16=True))
    errbf = jnp.max(jnp.abs(out_bf16 - ref))
    assert jnp.allclose(out_bf16, ref, atol=5e-2, rtol=5e-2), (
        f"bf16 path max abs err {errbf}")

    print("KERNEL_OK")
</pallas_src>

<mosaic_0001>
module attributes {stable_mosaic.version = 11 : i64} {
  func.func @_mlp_kernel(%arg0: i32, %arg1: memref<20x128xf32, #tpu.memory_space<vmem>>, %arg2: memref<32x20xf32, #tpu.memory_space<vmem>>, %arg3: memref<32x1xf32, #tpu.memory_space<vmem>>, %arg4: memref<32x32xf32, #tpu.memory_space<vmem>>, %arg5: memref<32x1xf32, #tpu.memory_space<vmem>>, %arg6: memref<4x32xf32, #tpu.memory_space<vmem>>, %arg7: memref<4x1xf32, #tpu.memory_space<vmem>>, %arg8: memref<4x1xf32, #tpu.memory_space<vmem>>, %arg9: memref<4x128xf32, #tpu.memory_space<vmem>>) attributes {dimension_semantics = [#tpu.dimension_semantics<parallel>], iteration_bounds = array<i64: 8>, scalar_prefetch = 0 : i64, scratch_operands = 0 : i64, tpu.core_type = #tpu.core_type<tc>, window_params = [{transform_indices = @transform_0, window_bounds = array<i64: 20, 128>}, {pipeline_mode = #tpu.pipeline_mode<synchronous>, transform_indices = @transform_1, window_bounds = array<i64: 32, 20>}, {pipeline_mode = #tpu.pipeline_mode<synchronous>, transform_indices = @transform_2, window_bounds = array<i64: 32, 1>}, {pipeline_mode = #tpu.pipeline_mode<synchronous>, transform_indices = @transform_3, window_bounds = array<i64: 32, 32>}, {pipeline_mode = #tpu.pipeline_mode<synchronous>, transform_indices = @transform_4, window_bounds = array<i64: 32, 1>}, {pipeline_mode = #tpu.pipeline_mode<synchronous>, transform_indices = @transform_5, window_bounds = array<i64: 4, 32>}, {pipeline_mode = #tpu.pipeline_mode<synchronous>, transform_indices = @transform_6, window_bounds = array<i64: 4, 1>}, {pipeline_mode = #tpu.pipeline_mode<synchronous>, transform_indices = @transform_7, window_bounds = array<i64: 4, 1>}, {transform_indices = @transform_8, window_bounds = array<i64: 4, 128>}]} {
    %c0 = arith.constant 0 : index
    %c0_0 = arith.constant 0 : index
    %0 = vector.load %arg1[%c0, %c0_0] : memref<20x128xf32, #tpu.memory_space<vmem>>, vector<20x128xf32>
    %c0_1 = arith.constant 0 : index
    %c0_2 = arith.constant 0 : index
    %1 = vector.load %arg2[%c0_1, %c0_2] : memref<32x20xf32, #tpu.memory_space<vmem>>, vector<32x20xf32>
    %cst = arith.constant dense<0.000000e+00> : vector<32x128xf32>
    %2 = tpu.matmul %1, %0, %cst {dimension_numbers = #tpu.dot_dimension_numbers<[1], [0], [0], [1], [0, 0, 1, 1], [], []>} : vector<32x20xf32>, vector<20x128xf32>, vector<32x128xf32> -> vector<32x128xf32>
    %c0_3 = arith.constant 0 : index
    %c0_4 = arith.constant 0 : index
    %3 = vector.load %arg3[%c0_3, %c0_4] : memref<32x1xf32, #tpu.memory_space<vmem>>, vector<32x1xf32>
    %4 = vector.broadcast %3 : vector<32x1xf32> to vector<32x128xf32>
    %5 = arith.addf %2, %4 : vector<32x128xf32>
    %cst_5 = arith.constant 0.00999999977 : f32
    %6 = vector.broadcast %cst_5 : f32 to vector<32x128xf32>
    %7 = arith.mulf %6, %5 : vector<32x128xf32>
    %8 = arith.maximumf %5, %7 : vector<32x128xf32>
    %c0_6 = arith.constant 0 : index
    %c0_7 = arith.constant 0 : index
    %9 = vector.load %arg4[%c0_6, %c0_7] : memref<32x32xf32, #tpu.memory_space<vmem>>, vector<32x32xf32>
    %cst_8 = arith.constant dense<0.000000e+00> : vector<32x128xf32>
    %10 = tpu.matmul %9, %8, %cst_8 {dimension_numbers = #tpu.dot_dimension_numbers<[1], [0], [0], [1], [0, 0, 1, 1], [], []>} : vector<32x32xf32>, vector<32x128xf32>, vector<32x128xf32> -> vector<32x128xf32>
    %c0_9 = arith.constant 0 : index
    %c0_10 = arith.constant 0 : index
    %11 = vector.load %arg5[%c0_9, %c0_10] : memref<32x1xf32, #tpu.memory_space<vmem>>, vector<32x1xf32>
    %12 = vector.broadcast %11 : vector<32x1xf32> to vector<32x128xf32>
    %13 = arith.addf %10, %12 : vector<32x128xf32>
    %cst_11 = arith.constant 0.00999999977 : f32
    %14 = vector.broadcast %cst_11 : f32 to vector<32x128xf32>
    %15 = arith.mulf %14, %13 : vector<32x128xf32>
    %16 = arith.maximumf %13, %15 : vector<32x128xf32>
    %c0_12 = arith.constant 0 : index
    %c0_13 = arith.constant 0 : index
    %17 = vector.load %arg6[%c0_12, %c0_13] : memref<4x32xf32, #tpu.memory_space<vmem>>, vector<4x32xf32>
    %cst_14 = arith.constant dense<0.000000e+00> : vector<4x128xf32>
    %18 = tpu.matmul %17, %16, %cst_14 {dimension_numbers = #tpu.dot_dimension_numbers<[1], [0], [0], [1], [0, 0, 1, 1], [], []>} : vector<4x32xf32>, vector<32x128xf32>, vector<4x128xf32> -> vector<4x128xf32>
    %c0_15 = arith.constant 0 : index
    %c0_16 = arith.constant 0 : index
    %19 = vector.load %arg7[%c0_15, %c0_16] : memref<4x1xf32, #tpu.memory_space<vmem>>, vector<4x1xf32>
    %20 = vector.broadcast %19 : vector<4x1xf32> to vector<4x128xf32>
    %21 = arith.addf %18, %20 : vector<4x128xf32>
    %cst_17 = arith.constant 0.000000e+00 : f32
    %22 = vector.broadcast %cst_17 : f32 to vector<4x128xf32>
    %23 = arith.maximumf %21, %22 : vector<4x128xf32>
    %c0_18 = arith.constant 0 : index
    %c0_19 = arith.constant 0 : index
    %24 = vector.load %arg8[%c0_18, %c0_19] : memref<4x1xf32, #tpu.memory_space<vmem>>, vector<4x1xf32>
    %25 = vector.broadcast %24 : vector<4x1xf32> to vector<4x128xf32>
    %26 = arith.addf %23, %25 : vector<4x128xf32>
    %c0_20 = arith.constant 0 : index
    %c0_21 = arith.constant 0 : index
    %27 = vector.load %arg9[%c0_20, %c0_21] : memref<4x128xf32, #tpu.memory_space<vmem>>, vector<4x128xf32>
    tpu.vector_store %arg9[%c0_20, %c0_21], %26 {strides = array<i32>} : memref<4x128xf32, #tpu.memory_space<vmem>>, vector<4x128xf32>,
    return
  }
  func.func @transform_0(%arg0: i32) -> (i32, i32) {
    %c0_i32 = arith.constant 0 : i32
    %c0_i32_0 = arith.constant 0 : i32
    return %c0_i32, %arg0 : i32, i32
  }
  func.func @transform_1(%arg0: i32) -> (i32, i32) {
    %c0_i32 = arith.constant 0 : i32
    %c0_i32_0 = arith.constant 0 : i32
    %c0_i32_1 = arith.constant 0 : i32
    return %c0_i32, %c0_i32_0 : i32, i32
  }
  func.func @transform_2(%arg0: i32) -> (i32, i32) {
    %c0_i32 = arith.constant 0 : i32
    %c0_i32_0 = arith.constant 0 : i32
    %c0_i32_1 = arith.constant 0 : i32
    return %c0_i32, %c0_i32_0 : i32, i32
  }
  func.func @transform_3(%arg0: i32) -> (i32, i32) {
    %c0_i32 = arith.constant 0 : i32
    %c0_i32_0 = arith.constant 0 : i32
    %c0_i32_1 = arith.constant 0 : i32
    return %c0_i32, %c0_i32_0 : i32, i32
  }
  func.func @transform_4(%arg0: i32) -> (i32, i32) {
    %c0_i32 = arith.constant 0 : i32
    %c0_i32_0 = arith.constant 0 : i32
    %c0_i32_1 = arith.constant 0 : i32
    return %c0_i32, %c0_i32_0 : i32, i32
  }
  func.func @transform_5(%arg0: i32) -> (i32, i32) {
    %c0_i32 = arith.constant 0 : i32
    %c0_i32_0 = arith.constant 0 : i32
    %c0_i32_1 = arith.constant 0 : i32
    return %c0_i32, %c0_i32_0 : i32, i32
  }
  func.func @transform_6(%arg0: i32) -> (i32, i32) {
    %c0_i32 = arith.constant 0 : i32
    %c0_i32_0 = arith.constant 0 : i32
    %c0_i32_1 = arith.constant 0 : i32
    return %c0_i32, %c0_i32_0 : i32, i32
  }
  func.func @transform_7(%arg0: i32) -> (i32, i32) {
    %c0_i32 = arith.constant 0 : i32
    %c0_i32_0 = arith.constant 0 : i32
    %c0_i32_1 = arith.constant 0 : i32
    return %c0_i32, %c0_i32_0 : i32, i32
  }
  func.func @transform_8(%arg0: i32) -> (i32, i32) {
    %c0_i32 = arith.constant 0 : i32
    %c0_i32_0 = arith.constant 0 : i32
    return %c0_i32, %arg0 : i32, i32
  }
}

</mosaic_0001>

<llo_original>
// kernel: tpu_custom_call.1
$region0: #{tpu_custom_call.1}
  #allocation0 [shape = 'u32[]', space=smem, size = 0x4, offset = 0x4, fixed_abs, tag = 'smem constant byte address 0x4 - core index']
  #allocation1 [shape = 'u32[144,128]{1,0:T(1,128)}', space=vmem, size = 0x12000, scoped, tag = 'internal scratch']
  %s0 = inlined_call_operand.hbm [shape: f32[20,1024], index: 0, kind: input, shape index: {}]
  %s1 = inlined_call_operand.vmem [shape: f32[32,20], index: 1, kind: input, shape index: {}]
  %s2 = inlined_call_operand.vmem [shape: f32[32,1], index: 2, kind: input, shape index: {}]
  %s3 = inlined_call_operand.vmem [shape: f32[32,32], index: 3, kind: input, shape index: {}]
  %s4 = inlined_call_operand.vmem [shape: f32[32,1], index: 4, kind: input, shape index: {}]
  %s5 = inlined_call_operand.vmem [shape: f32[4,32], index: 5, kind: input, shape index: {}]
  %s6 = inlined_call_operand.vmem [shape: f32[4,1], index: 6, kind: input, shape index: {}]
  %s7 = inlined_call_operand.vmem [shape: f32[4,1], index: 7, kind: input, shape index: {}]
  %s8 = inlined_call_operand.hbm [shape: f32[4,1024], index: 8, kind: output, shape index: {}]
  %s9 = sld [smem:[#allocation0]]
  $region69: #{tpu_custom_call.1} parent=0
    _
  %s11 = ssub.s32 1, %s9
  %s12 = scalar_select 0, %s11, %s9
  $region1: #{tpu_custom_call.1} parent=0
    #allocation2 [shape = 'u8[24576]{0}', space=vmem, size = 0x6000, scoped, tag = 'input window, operand 0']
    #allocation3 [shape = 's32[2]{0}', space=sflag, size = 0x8, scoped, tag = 'scoped memory for tpu_custom_call.1']
    #allocation4 [shape = 's32[2]{0}', space=sflag, size = 0x8, scoped, tag = 'scoped memory for tpu_custom_call.1']
    #allocation5 [shape = 'u8[4096]{0}', space=vmem, size = 0x1000, scoped, tag = 'output window, operand 0']
    %13 = vsyncpa [#allocation3], 0
    %s14 = scalar_lea.sflag [#allocation3], 1
    %15 = vsyncpa %s14, 0
    %16 = vsyncpa [#allocation4], 0
    %s17 = scalar_lea.sflag [#allocation4], 1
    %18 = vsyncpa %s17, 0
    loop: start=0, step=1, limit=10
    $region2: #{tpu_custom_call.1} parent=1 // loop_pre_header
      _
    $region3: #{tpu_custom_call.1} parent=1 // loop_header
      %s20 = sphi 0, %s24
      %p21 = scmp.ge.s32.totalorder %s20, 10
      %s30 = sphi 0, %s32
      %s33 = sphi 0, %s30
      %s34 = sphi 0, %s33
      %s50 = sphi 0, %s34
      %s54 = sphi 0, %s54
      %s56 = sphi 0, %s54
      %s57 = sphi 0, %s56
      %s71 = sphi 0, %s57
      %s75 = sphi 0, %s75
      %s77 = sphi 0, %s75
      %s78 = sphi 0, %s77
      %s92 = sphi 0, %s78
      %s96 = sphi 0, %s96
      %s98 = sphi 0, %s96
      %s99 = sphi 0, %s98
      %s113 = sphi 0, %s99
      %s117 = sphi 0, %s117
      %s119 = sphi 0, %s117
      %s120 = sphi 0, %s119
      %s134 = sphi 0, %s120
      %s138 = sphi 0, %s138
      %s140 = sphi 0, %s138
      %s141 = sphi 0, %s140
      %s155 = sphi 0, %s141
      %s159 = sphi 0, %s159
      %s161 = sphi 0, %s159
      %s162 = sphi 0, %s161
      %s176 = sphi 0, %s162
      %s180 = sphi 0, %s180
      %s182 = sphi 0, %s180
      %s183 = sphi 0, %s182
      %s197 = sphi 0, %s183
      %s203 = sphi 0, %s205
      %s206 = sphi 0, %s203
      %s207 = sphi 0, %s206
      %s223 = sphi 0, %s207
    $region4: #{tpu_custom_call.1} parent=1 // loop_header_branch
      %23 = sbr.rel (%p21) target = $region8
    $region5: #{tpu_custom_call.1} parent=1 // loop_body
      %s25 = ssub.s32 %s20, 1
      %s26 = ssub.s32 %s20, 2
      %s27 = sadd.s32 %s20, 1
      %s28 = ssub.s32 %s20, %s27
      %p29 = scmp.eq.s32.totalorder %s28, 0
      %s31 = sadd.s32 %s30, 1
      %s32 = scalar_select %p29, %s30, %s31
      %p35 = pneg %p29
      %p36 = scmp.eq.s32.totalorder %s20, 7
      %p37 = por %p35, %p36
      %p38 = scmp.ne.s32.totalorder %s30, %s33
      %p39 = scmp.eq.s32.totalorder %s20, 0
      %p40 = por %p38, %p39
      %p41 = scmp.ne.s32.totalorder %s30, %s33
      %p42 = scmp.eq.s32.totalorder %s25, 7
      %p43 = por %p41, %p42
      %p44 = scmp.ne.s32.totalorder %s33, %s34
      %p45 = scmp.eq.s32.totalorder %s25, 0
      %p46 = por %p44, %p45
      %p47 = scmp.ne.s32.totalorder %s33, %s34
      %p48 = scmp.eq.s32.totalorder %s26, 7
      %p49 = por %p47, %p48
      %p51 = scmp.ne.s32.totalorder %s34, %s50
      %p52 = scmp.eq.s32.totalorder %s26, 0
      %p53 = por %p51, %p52
      %s55 = sadd.s32 %s54, 1
      %p58 = scmp.eq.s32.totalorder %s20, 7
      %p59 = scmp.ne.s32.totalorder %s54, %s56
      %p60 = scmp.eq.s32.totalorder %s20, 0
      %p61 = por %p59, %p60
      %p62 = scmp.ne.s32.totalorder %s54, %s56
      %p63 = scmp.eq.s32.totalorder %s25, 7
      %p64 = por %p62, %p63
      %p65 = scmp.ne.s32.totalorder %s56, %s57
      %p66 = scmp.eq.s32.totalorder %s25, 0
      %p67 = por %p65, %p66
      %p68 = scmp.ne.s32.totalorder %s56, %s57
      %p69 = scmp.eq.s32.totalorder %s26, 7
      %p70 = por %p68, %p69
      %p72 = scmp.ne.s32.totalorder %s57, %s71
      %p73 = scmp.eq.s32.totalorder %s26, 0
      %p74 = por %p72, %p73
      %s76 = sadd.s32 %s75, 1
      %p79 = scmp.eq.s32.totalorder %s20, 7
      %p80 = scmp.ne.s32.totalorder %s75, %s77
      %p81 = scmp.eq.s32.totalorder %s20, 0
      %p82 = por %p80, %p81
      %p83 = scmp.ne.s32.totalorder %s75, %s77
      %p84 = scmp.eq.s32.totalorder %s25, 7
      %p85 = por %p83, %p84
      %p86 = scmp.ne.s32.totalorder %s77, %s78
      %p87 = scmp.eq.s32.totalorder %s25, 0
      %p88 = por %p86, %p87
      %p89 = scmp.ne.s32.totalorder %s77, %s78
      %p90 = scmp.eq.s32.totalorder %s26, 7
      %p91 = por %p89, %p90
      %p93 = scmp.ne.s32.totalorder %s78, %s92
      %p94 = scmp.eq.s32.totalorder %s26, 0
      %p95 = por %p93, %p94
      %s97 = sadd.s32 %s96, 1
      %p100 = scmp.eq.s32.totalorder %s20, 7
      %p101 = scmp.ne.s32.totalorder %s96, %s98
      %p102 = scmp.eq.s32.totalorder %s20, 0
      %p103 = por %p101, %p102
      %p104 = scmp.ne.s32.totalorder %s96, %s98
      %p105 = scmp.eq.s32.totalorder %s25, 7
      %p106 = por %p104, %p105
      %p107 = scmp.ne.s32.totalorder %s98, %s99
      %p108 = scmp.eq.s32.totalorder %s25, 0
      %p109 = por %p107, %p108
      %p110 = scmp.ne.s32.totalorder %s98, %s99
      %p111 = scmp.eq.s32.totalorder %s26, 7
      %p112 = por %p110, %p111
      %p114 = scmp.ne.s32.totalorder %s99, %s113
      %p115 = scmp.eq.s32.totalorder %s26, 0
      %p116 = por %p114, %p115
      %s118 = sadd.s32 %s117, 1
      %p121 = scmp.eq.s32.totalorder %s20, 7
      %p122 = scmp.ne.s32.totalorder %s117, %s119
      %p123 = scmp.eq.s32.totalorder %s20, 0
      %p124 = por %p122, %p123
      %p125 = scmp.ne.s32.totalorder %s117, %s119
      %p126 = scmp.eq.s32.totalorder %s25, 7
      %p127 = por %p125, %p126
      %p128 = scmp.ne.s32.totalorder %s119, %s120
      %p129 = scmp.eq.s32.totalorder %s25, 0
      %p130 = por %p128, %p129
      %p131 = scmp.ne.s32.totalorder %s119, %s120
      %p132 = scmp.eq.s32.totalorder %s26, 7
      %p133 = por %p131, %p132
      %p135 = scmp.ne.s32.totalorder %s120, %s134
      %p136 = scmp.eq.s32.totalorder %s26, 0
      %p137 = por %p135, %p136
      %s139 = sadd.s32 %s138, 1
      %p142 = scmp.eq.s32.totalorder %s20, 7
      %p143 = scmp.ne.s32.totalorder %s138, %s140
      %p144 = scmp.eq.s32.totalorder %s20, 0
      %p145 = por %p143, %p144
      %p146 = scmp.ne.s32.totalorder %s138, %s140
      %p147 = scmp.eq.s32.totalorder %s25, 7
      %p148 = por %p146, %p147
      %p149 = scmp.ne.s32.totalorder %s140, %s141
      %p150 = scmp.eq.s32.totalorder %s25, 0
      %p151 = por %p149, %p150
      %p152 = scmp.ne.s32.totalorder %s140, %s141
      %p153 = scmp.eq.s32.totalorder %s26, 7
      %p154 = por %p152, %p153
      %p156 = scmp.ne.s32.totalorder %s141, %s155
      %p157 = scmp.eq.s32.totalorder %s26, 0
      %p158 = por %p156, %p157
      %s160 = sadd.s32 %s159, 1
      %p163 = scmp.eq.s32.totalorder %s20, 7
      %p164 = scmp.ne.s32.totalorder %s159, %s161
      %p165 = scmp.eq.s32.totalorder %s20, 0
      %p166 = por %p164, %p165
      %p167 = scmp.ne.s32.totalorder %s159, %s161
      %p168 = scmp.eq.s32.totalorder %s25, 7
      %p169 = por %p167, %p168
      %p170 = scmp.ne.s32.totalorder %s161, %s162
      %p171 = scmp.eq.s32.totalorder %s25, 0
      %p172 = por %p170, %p171
      %p173 = scmp.ne.s32.totalorder %s161, %s162
      %p174 = scmp.eq.s32.totalorder %s26, 7
      %p175 = por %p173, %p174
      %p177 = scmp.ne.s32.totalorder %s162, %s176
      %p178 = scmp.eq.s32.totalorder %s26, 0
      %p179 = por %p177, %p178
      %s181 = sadd.s32 %s180, 1
      %p184 = scmp.eq.s32.totalorder %s20, 7
      %p185 = scmp.ne.s32.totalorder %s180, %s182
      %p186 = scmp.eq.s32.totalorder %s20, 0
      %p187 = por %p185, %p186
      %p188 = scmp.ne.s32.totalorder %s180, %s182
      %p189 = scmp.eq.s32.totalorder %s25, 7
      %p190 = por %p188, %p189
      %p191 = scmp.ne.s32.totalorder %s182, %s183
      %p192 = scmp.eq.s32.totalorder %s25, 0
      %p193 = por %p191, %p192
      %p194 = scmp.ne.s32.totalorder %s182, %s183
      %p195 = scmp.eq.s32.totalorder %s26, 7
      %p196 = por %p194, %p195
      %p198 = scmp.ne.s32.totalorder %s183, %s197
      %p199 = scmp.eq.s32.totalorder %s26, 0
      %p200 = por %p198, %p199
      %s201 = ssub.s32 %s20, %s27
      %p202 = scmp.eq.s32.totalorder %s201, 0
      %s204 = sadd.s32 %s203, 1
      %s205 = scalar_select %p202, %s203, %s204
      %p208 = pneg %p202
      %p209 = scmp.eq.s32.totalorder %s20, 7
      %p210 = por %p208, %p209
      %p211 = scmp.ne.s32.totalorder %s203, %s206
      %p212 = scmp.eq.s32.totalorder %s20, 0
      %p213 = por %p211, %p212
      %p214 = scmp.ne.s32.totalorder %s203, %s206
      %p215 = scmp.eq.s32.totalorder %s25, 7
      %p216 = por %p214, %p215
      %p217 = scmp.ne.s32.totalorder %s206, %s207
      %p218 = scmp.eq.s32.totalorder %s25, 0
      %p219 = por %p217, %p218
      %p220 = scmp.ne.s32.totalorder %s206, %s207
      %p221 = scmp.eq.s32.totalorder %s26, 7
      %p222 = por %p220, %p221
      %p224 = scmp.ne.s32.totalorder %s207, %s223
      %p225 = scmp.eq.s32.totalorder %s26, 0
      %p226 = por %p224, %p225
      %p227 = scmp.le.s32.totalorder 1, %s20
      %p228 = scmp.lt.s32.totalorder %s20, 9
      %p229 = pnand %p227, %p228
      %p230 = pneg %p229
      // Predicated region
      $region9: #{tpu_custom_call.1} parent=5 // pred_check
        _
      $region10: #{tpu_custom_call.1} parent=5 // pred_check_branch
        %232 = sbr.rel (%p229) target = $region12
      $region11: #{tpu_custom_call.1} parent=5 // pred_region
        %s233 = ssub.s32 %s20, 1
        // Predicated region
        $region13: #{tpu_custom_call.1} parent=11 // pred_check
          %p234 = pneg %p67
        $region14: #{tpu_custom_call.1} parent=11 // pred_check_branch
          %236 = sbr.rel (%p234) target = $region16
        $region15: #{tpu_custom_call.1} parent=11 // pred_region
          _
        $region16: #{tpu_custom_call.1} parent=11 // pred_fallthru
          _
        // Predicated region
        $region17: #{tpu_custom_call.1} parent=11 // pred_check
          %p237 = pneg %p88
        $region18: #{tpu_custom_call.1} parent=11 // pred_check_branch
          %239 = sbr.rel (%p237) target = $region20
        $region19: #{tpu_custom_call.1} parent=11 // pred_region
          _
        $region20: #{tpu_custom_call.1} parent=11 // pred_fallthru
          _
        // Predicated region
        $region21: #{tpu_custom_call.1} parent=11 // pred_check
          %p240 = pneg %p109
        $region22: #{tpu_custom_call.1} parent=11 // pred_check_branch
          %242 = sbr.rel (%p240) target = $region24
        $region23: #{tpu_custom_call.1} parent=11 // pred_region
          _
        $region24: #{tpu_custom_call.1} parent=11 // pred_fallthru
          _
        // Predicated region
        $region25: #{tpu_custom_call.1} parent=11 // pred_check
          %p243 = pneg %p130
        $region26: #{tpu_custom_call.1} parent=11 // pred_check_branch
          %245 = sbr.rel (%p243) target = $region28
        $region27: #{tpu_custom_call.1} parent=11 // pred_region
          _
        $region28: #{tpu_custom_call.1} parent=11 // pred_fallthru
          _
        // Predicated region
        $region29: #{tpu_custom_call.1} parent=11 // pred_check
          %p246 = pneg %p151
        $region30: #{tpu_custom_call.1} parent=11 // pred_check_branch
          %248 = sbr.rel (%p246) target = $region32
        $region31: #{tpu_custom_call.1} parent=11 // pred_region
          _
        $region32: #{tpu_custom_call.1} parent=11 // pred_fallthru
          _
        // Predicated region
        $region33: #{tpu_custom_call.1} parent=11 // pred_check
          %p249 = pneg %p172
        $region34: #{tpu_custom_call.1} parent=11 // pred_check_branch
          %251 = sbr.rel (%p249) target = $region36
        $region35: #{tpu_custom_call.1} parent=11 // pred_region
          _
        $region36: #{tpu_custom_call.1} parent=11 // pred_fallthru
          _
        // Predicated region
        $region37: #{tpu_custom_call.1} parent=11 // pred_check
          %p252 = pneg %p193
        $region38: #{tpu_custom_call.1} parent=11 // pred_check_branch
          %254 = sbr.rel (%p252) target = $region40
        $region39: #{tpu_custom_call.1} parent=11 // pred_region
          _
        $region40: #{tpu_custom_call.1} parent=11 // pred_fallthru
          _
      $region12: #{tpu_custom_call.1} parent=5 // pred_fallthru
        _
      %p255 = scmp.lt.s32.totalorder %s20, 8
      // Predicated region
      $region41: #{tpu_custom_call.1} parent=5 // pred_check
        %p256 = pneg %p255
      $region42: #{tpu_custom_call.1} parent=5 // pred_check_branch
        %258 = sbr.rel (%p256) target = $region44
      $region43: #{tpu_custom_call.1} parent=5 // pred_region
        // Predicated region
        $region45: #{tpu_custom_call.1} parent=43 // pred_check
          %p259 = pneg %p40
        $region46: #{tpu_custom_call.1} parent=43 // pred_check_branch
          %261 = sbr.rel (%p259) target = $region48
        $region47: #{tpu_custom_call.1} parent=43 // pred_region
          %s262 = sand.u32 %s30, 1
          %s263 = scalar_lea.sflag [#allocation3], %s262
          %s264 = sand.u32 %s30, 1
          %s265 = smul.addr %s264, 24
          %s266 = scalar_lea.vmem [#allocation2], %s265
          %s268 = ssub.s32 384, 384
          %269 = vsyncadd %s263, %s268
          %s270 = smul.addr %s20, 128
          %s271 = scalar_lea.hbm %s0, %s270
          %s272 = sshll.u32 %s266, 4
          %s273 = int_to_ptr.vmem [resolvable:$true] %s272
          %278 = dma.hbm_to_vmem [thread:$0]  %s271, 384, %s273, %s263, 1024, 128, 8
        $region48: #{tpu_custom_call.1} parent=43 // pred_fallthru
          _
      $region44: #{tpu_custom_call.1} parent=5 // pred_fallthru
        _
      %p279 = scmp.le.s32.totalorder 1, %s20
      %p280 = scmp.lt.s32.totalorder %s20, 9
      %p281 = pnand %p279, %p280
      %p282 = pneg %p281
      // Predicated region
      $region49: #{tpu_custom_call.1} parent=5 // pred_check
        _
      $region50: #{tpu_custom_call.1} parent=5 // pred_check_branch
        %284 = sbr.rel (%p281) target = $region52
      $region51: #{tpu_custom_call.1} parent=5 // pred_region
        %s285 = ssub.s32 %s20, 1
        %s286 = sand.u32 %s33, 1
        %s287 = scalar_lea.sflag [#allocation3], %s286
        %s288 = sand.u32 %s33, 1
        %s289 = smul.addr %s288, 24
        %s290 = scalar_lea.vmem [#allocation2], %s289
        // Predicated region
        $region53: #{tpu_custom_call.1} parent=51 // pred_check
          %p291 = pneg %p46
        $region54: #{tpu_custom_call.1} parent=51 // pred_check_branch
          %293 = sbr.rel (%p291) target = $region56
        $region55: #{tpu_custom_call.1} parent=51 // pred_region
          %294 = dma.done %s287, 384
        $region56: #{tpu_custom_call.1} parent=51 // pred_fallthru
          _
        %s295 = sand.u32 %s33, 1
        %s296 = scalar_lea.sflag [#allocation3], %s295
        %s297 = sand.u32 %s33, 1
        %s298 = smul.addr %s297, 24
        %s299 = scalar_lea.vmem [#allocation2], %s298
        %p300 = pneg %p46
        %p301 = pneg %p43
        %p302 = pneg %p67
        %p303 = pneg %p64
        %p304 = pneg %p88
        %p305 = pneg %p85
        %p306 = pneg %p109
        %p307 = pneg %p106
        %p308 = pneg %p130
        %p309 = pneg %p127
        %p310 = pneg %p151
        %p311 = pneg %p148
        %p312 = pneg %p172
        %p313 = pneg %p169
        %p314 = pneg %p193
        %p315 = pneg %p190
        %p316 = pneg %p219
        %p317 = pneg %p216
        %s318 = sand.u32 %s206, 1
        %s319 = scalar_lea.sflag [#allocation4], %s318
        %s320 = sand.u32 %s206, 1
        %s321 = smul.addr %s320, 4
        %s322 = scalar_lea.vmem [#allocation5], %s321
        %v323 = vld [vmem:[%s290] sm:$0xff]
        %v324 = vld [vmem:[%s290 + $0x8] sm:$0xff]
        %v325 = vld [vmem:[%s290 + $0x10] sm:$0xf]
        %v326 = vld [vmem:[%s1] sm:$0xff]
        %v327 = vld [vmem:[%s1 + $0x8] sm:$0xff]
        %v328 = vld [vmem:[%s1 + $0x10] sm:$0xff]
        %v329 = vld [vmem:[%s1 + $0x18] sm:$0xff]
        %v330 = vld [vmem:[%s2] sm:$0xff]
        %v331 = vld [vmem:[%s2 + $0x8] sm:$0xff]
        %v332 = vld [vmem:[%s2 + $0x10] sm:$0xff]
        %v333 = vld [vmem:[%s2 + $0x18] sm:$0xff]
        %335 = vset.pattern.permute.xlu0 0
        %336 = vperm.xlu0 %335, %v330
        %v337 = vpop.permute.xlu0 %336
        %340 = vset.pattern.permute.xlu0 0
        %341 = vperm.xlu0 %340, %v331
        %v342 = vpop.permute.xlu0 %341
        %345 = vset.pattern.permute.xlu0 0
        %346 = vperm.xlu0 %345, %v332
        %v347 = vpop.permute.xlu0 %346
        %350 = vset.pattern.permute.xlu0 0
        %351 = vperm.xlu0 %350, %v333
        %v352 = vpop.permute.xlu0 %351
        %vm354 = vcmask 162816
        %v356 = vsel %vm354, %v326, 0
        %v359 = vsel %vm354, %v327, 0
        %v362 = vsel %vm354, %v328, 0
        %v365 = vsel %vm354, %v329, 0
        %vm367 = vcmask 1043456
        %v369 = vsel %vm367, %v325, 0
        %371 = vmatprep.subr.mxu0 0.0
        %372 = vmatpush1.msra.mxu0 %v323
        %373 = vmatprep.subr.mxu0 0.0
        %374 = vmatpush1.msra.mxu0 %v324
        %375 = vmatprep.subr.mxu0 0.0
        %376 = vmatpush1.msra.mxu0 %v369
        %377 = vmatprep.subr.mxu0 0.0
        %378 = vmatpush1.msra.mxu0 0.0
        %379 = vmatprep.subr.mxu0 0.0
        %380 = vmatpush1.msra.mxu0 0.0
        %381 = vmatprep.subr.mxu0 0.0
        %382 = vmatpush1.msra.mxu0 0.0
        %383 = vmatprep.subr.mxu0 0.0
        %384 = vmatpush1.msra.mxu0 0.0
        %385 = vmatprep.subr.mxu0 0.0
        %386 = vmatpush1.msra.mxu0 0.0
        %387 = vmatprep.subr.mxu0 0.0
        %388 = vmatpush1.msra.mxu0 0.0
        %389 = vmatprep.subr.mxu0 0.0
        %390 = vmatpush1.msra.mxu0 0.0
        %391 = vmatprep.subr.mxu0 0.0
        %392 = vmatpush1.msra.mxu0 0.0
        %393 = vmatprep.subr.mxu0 0.0
        %394 = vmatpush1.msra.mxu0 0.0
        %395 = vmatprep.subr.mxu0 0.0
        %396 = vmatpush1.msra.mxu0 0.0
        %397 = vmatprep.subr.mxu0 0.0
        %398 = vmatpush1.msra.mxu0 0.0
        %399 = vmatprep.subr.mxu0 0.0
        %400 = vmatpush1.msra.mxu0 0.0
        %401 = vmatprep.subr.mxu0 0.0
        %402 = vmatpush1.msra.mxu0 0.0
        %403 = vmatprep.subr.mxu0 0.0
        %404 = vmatpush1.msra.mxu0 0.0
        %405 = vmatprep.subr.mxu0 0.0
        %406 = vmatpush1.msra.mxu0 0.0
        %407 = vmatprep.subr.mxu0 0.0
        %408 = vmatpush1.msra.mxu0 0.0
        %409 = vmatprep.subr.mxu0 0.0
        %410 = vmatpush1.msra.mxu0 0.0
        %411 = vmatprep.subr.mxu0 0.0
        %412 = vmatpush1.msra.mxu0 0.0
        %413 = vmatprep.subr.mxu0 0.0
        %414 = vmatpush1.msra.mxu0 0.0
        %415 = vmatprep.subr.mxu0 0.0
        %416 = vmatpush1.msra.mxu0 0.0
        %417 = vmatprep.subr.mxu0 0.0
        %418 = vmatpush1.msra.mxu0 0.0
        %419 = vmatprep.subr.mxu0 0.0
        %420 = vmatpush1.msra.mxu0 0.0
        %421 = vmatprep.subr.mxu0 0.0
        %422 = vmatpush1.msra.mxu0 0.0
        %423 = vmatprep.subr.mxu0 0.0
        %424 = vmatpush1.msra.mxu0 0.0
        %425 = vmatprep.subr.mxu0 0.0
        %426 = vmatpush1.msra.mxu0 0.0
        %427 = vmatprep.subr.mxu0 0.0
        %428 = vmatpush1.msra.mxu0 0.0
        %429 = vmatprep.subr.mxu0 0.0
        %430 = vmatpush1.msra.mxu0 0.0
        %431 = vmatprep.subr.mxu0 0.0
        %432 = vmatpush1.msra.mxu0 0.0
        %433 = vmatprep.subr.mxu0 0.0
        %434 = vmatpush1.msra.mxu0 0.0
        %435 = vmatprep.mubr.f32.mxu0 0.0
        %436 = vmatmul.mubr.f32.gmra.mrb[0].mxu0 %v356
        %v437 = vpop.f32.mrb[0].mxu0
        %v438 = vadd.f32 %v337, %v437
        %v439 = vpop.f32.mrb[0].mxu0
        %440 = vmatprep.mubr.f32.mxu0 0.0
        %441 = vmatmul.mubr.f32.gmra.mrb[0].mxu0 %v359
        %v442 = vpop.f32.mrb[0].mxu0
        %v443 = vadd.f32 %v342, %v442
        %v444 = vpop.f32.mrb[0].mxu0
        %445 = vmatprep.mubr.f32.mxu0 0.0
        %446 = vmatmul.mubr.f32.gmra.mrb[0].mxu0 %v362
        %v447 = vpop.f32.mrb[0].mxu0
        %v448 = vadd.f32 %v347, %v447
        %v449 = vpop.f32.mrb[0].mxu0
        %450 = vmatprep.mubr.f32.mxu0 0.0
        %451 = vmatmul.mubr.f32.gmra.mrb[0].mxu0 %v365
        %v452 = vpop.f32.mrb[0].mxu0
        %v453 = vadd.f32 %v352, %v452
        %v454 = vpop.f32.mrb[0].mxu0
        %455 = vdwg.mxu0
        %v456 = vmul.f32 %v438, 0.01
        %v457 = vmul.f32 %v443, 0.01
        %v458 = vmul.f32 %v448, 0.01
        %v459 = vmul.f32 %v453, 0.01
        %v460 = vmax.f32 %v438, %v456
        %v461 = vmax.f32 %v443, %v457
        %v462 = vmax.f32 %v448, %v458
        %v463 = vmax.f32 %v453, %v459
        %v464 = vld [vmem:[%s3] sm:$0xff]
        %v465 = vld [vmem:[%s3 + $0x8] sm:$0xff]
        %v466 = vld [vmem:[%s3 + $0x10] sm:$0xff]
        %v467 = vld [vmem:[%s3 + $0x18] sm:$0xff]
        %v468 = vld [vmem:[%s4] sm:$0xff]
        %v469 = vld [vmem:[%s4 + $0x8] sm:$0xff]
        %v470 = vld [vmem:[%s4 + $0x10] sm:$0xff]
        %v471 = vld [vmem:[%s4 + $0x18] sm:$0xff]
        %473 = vset.pattern.permute.xlu0 0
        %474 = vperm.xlu0 %473, %v468
        %v475 = vpop.permute.xlu0 %474
        %478 = vset.pattern.permute.xlu0 0
        %479 = vperm.xlu0 %478, %v469
        %v480 = vpop.permute.xlu0 %479
        %483 = vset.pattern.permute.xlu0 0
        %484 = vperm.xlu0 %483, %v470
        %v485 = vpop.permute.xlu0 %484
        %488 = vset.pattern.permute.xlu0 0
        %489 = vperm.xlu0 %488, %v471
        %v490 = vpop.permute.xlu0 %489
        %vm492 = vcmask 261120
        %v494 = vsel %vm492, %v464, 0
        %v497 = vsel %vm492, %v465, 0
        %v500 = vsel %vm492, %v466, 0
        %v503 = vsel %vm492, %v467, 0
        %505 = vmatprep.subr.mxu0 0.0
        %506 = vmatpush1.msra.mxu0 %v460
        %507 = vmatprep.subr.mxu0 0.0
        %508 = vmatpush1.msra.mxu0 %v461
        %509 = vmatprep.subr.mxu0 0.0
        %510 = vmatpush1.msra.mxu0 %v462
        %511 = vmatprep.subr.mxu0 0.0
        %512 = vmatpush1.msra.mxu0 %v463
        %513 = vmatprep.subr.mxu0 0.0
        %514 = vmatpush1.msra.mxu0 0.0
        %515 = vmatprep.subr.mxu0 0.0
        %516 = vmatpush1.msra.mxu0 0.0
        %517 = vmatprep.subr.mxu0 0.0
        %518 = vmatpush1.msra.mxu0 0.0
        %519 = vmatprep.subr.mxu0 0.0
        %520 = vmatpush1.msra.mxu0 0.0
        %521 = vmatprep.subr.mxu0 0.0
        %522 = vmatpush1.msra.mxu0 0.0
        %523 = vmatprep.subr.mxu0 0.0
        %524 = vmatpush1.msra.mxu0 0.0
        %525 = vmatprep.subr.mxu0 0.0
        %526 = vmatpush1.msra.mxu0 0.0
        %527 = vmatprep.subr.mxu0 0.0
        %528 = vmatpush1.msra.mxu0 0.0
        %529 = vmatprep.subr.mxu0 0.0
        %530 = vmatpush1.msra.mxu0 0.0
        %531 = vmatprep.subr.mxu0 0.0
        %532 = vmatpush1.msra.mxu0 0.0
        %533 = vmatprep.subr.mxu0 0.0
        %534 = vmatpush1.msra.mxu0 0.0
        %535 = vmatprep.subr.mxu0 0.0
        %536 = vmatpush1.msra.mxu0 0.0
        %537 = vmatprep.subr.mxu0 0.0
        %538 = vmatpush1.msra.mxu0 0.0
        %539 = vmatprep.subr.mxu0 0.0
        %540 = vmatpush1.msra.mxu0 0.0
        %541 = vmatprep.subr.mxu0 0.0
        %542 = vmatpush1.msra.mxu0 0.0
        %543 = vmatprep.subr.mxu0 0.0
        %544 = vmatpush1.msra.mxu0 0.0
        %545 = vmatprep.subr.mxu0 0.0
        %546 = vmatpush1.msra.mxu0 0.0
        %547 = vmatprep.subr.mxu0 0.0
        %548 = vmatpush1.msra.mxu0 0.0
        %549 = vmatprep.subr.mxu0 0.0
        %550 = vmatpush1.msra.mxu0 0.0
        %551 = vmatprep.subr.mxu0 0.0
        %552 = vmatpush1.msra.mxu0 0.0
        %553 = vmatprep.subr.mxu0 0.0
        %554 = vmatpush1.msra.mxu0 0.0
        %555 = vmatprep.subr.mxu0 0.0
        %556 = vmatpush1.msra.mxu0 0.0
        %557 = vmatprep.subr.mxu0 0.0
        %558 = vmatpush1.msra.mxu0 0.0
        %559 = vmatprep.subr.mxu0 0.0
        %560 = vmatpush1.msra.mxu0 0.0
        %561 = vmatprep.subr.mxu0 0.0
        %562 = vmatpush1.msra.mxu0 0.0
        %563 = vmatprep.subr.mxu0 0.0
        %564 = vmatpush1.msra.mxu0 0.0
        %565 = vmatprep.subr.mxu0 0.0
        %566 = vmatpush1.msra.mxu0 0.0
        %567 = vmatprep.subr.mxu0 0.0
        %568 = vmatpush1.msra.mxu0 0.0
        %569 = vmatprep.mubr.f32.mxu0 0.0
        %570 = vmatmul.mubr.f32.gmra.mrb[0].mxu0 %v494
        %v571 = vpop.f32.mrb[0].mxu0
        %v572 = vadd.f32 %v475, %v571
        %v573 = vpop.f32.mrb[0].mxu0
        %574 = vmatprep.mubr.f32.mxu0 0.0
        %575 = vmatmul.mubr.f32.gmra.mrb[0].mxu0 %v497
        %v576 = vpop.f32.mrb[0].mxu0
        %v577 = vadd.f32 %v480, %v576
        %v578 = vpop.f32.mrb[0].mxu0
        %579 = vmatprep.mubr.f32.mxu0 0.0
        %580 = vmatmul.mubr.f32.gmra.mrb[0].mxu0 %v500
        %v581 = vpop.f32.mrb[0].mxu0
        %v582 = vadd.f32 %v485, %v581
        %v583 = vpop.f32.mrb[0].mxu0
        %584 = vmatprep.mubr.f32.mxu0 0.0
        %585 = vmatmul.mubr.f32.gmra.mrb[0].mxu0 %v503
        %v586 = vpop.f32.mrb[0].mxu0
        %v587 = vadd.f32 %v490, %v586
        %v588 = vpop.f32.mrb[0].mxu0
        %589 = vdwg.mxu0
        %v590 = vmul.f32 %v572, 0.01
        %v591 = vmul.f32 %v577, 0.01
        %v592 = vmul.f32 %v582, 0.01
        %v593 = vmul.f32 %v587, 0.01
        %v594 = vmax.f32 %v572, %v590
        %v595 = vmax.f32 %v577, %v591
        %v596 = vmax.f32 %v582, %v592
        %v597 = vmax.f32 %v587, %v593
        %v598 = vld [vmem:[%s5] sm:$0xf]
        %v599 = vld [vmem:[%s6] sm:$0xf]
        %601 = vset.pattern.permute.xlu0 0
        %602 = vperm.xlu0 %601, %v599
        %v603 = vpop.permute.xlu0 %602
        %v606 = vsel %vm492, %v598, 0
        %608 = vmatprep.subr.mxu0 0.0
        %609 = vmatpush1.msra.mxu0 %v594
        %610 = vmatprep.subr.mxu0 0.0
        %611 = vmatpush1.msra.mxu0 %v595
        %612 = vmatprep.subr.mxu0 0.0
        %613 = vmatpush1.msra.mxu0 %v596
        %614 = vmatprep.subr.mxu0 0.0
        %615 = vmatpush1.msra.mxu0 %v597
        %616 = vmatprep.subr.mxu0 0.0
        %617 = vmatpush1.msra.mxu0 0.0
        %618 = vmatprep.subr.mxu0 0.0
        %619 = vmatpush1.msra.mxu0 0.0
        %620 = vmatprep.subr.mxu0 0.0
        %621 = vmatpush1.msra.mxu0 0.0
        %622 = vmatprep.subr.mxu0 0.0
        %623 = vmatpush1.msra.mxu0 0.0
        %624 = vmatprep.subr.mxu0 0.0
        %625 = vmatpush1.msra.mxu0 0.0
        %626 = vmatprep.subr.mxu0 0.0
        %627 = vmatpush1.msra.mxu0 0.0
        %628 = vmatprep.subr.mxu0 0.0
        %629 = vmatpush1.msra.mxu0 0.0
        %630 = vmatprep.subr.mxu0 0.0
        %631 = vmatpush1.msra.mxu0 0.0
        %632 = vmatprep.subr.mxu0 0.0
        %633 = vmatpush1.msra.mxu0 0.0
        %634 = vmatprep.subr.mxu0 0.0
        %635 = vmatpush1.msra.mxu0 0.0
        %636 = vmatprep.subr.mxu0 0.0
        %637 = vmatpush1.msra.mxu0 0.0
        %638 = vmatprep.subr.mxu0 0.0
        %639 = vmatpush1.msra.mxu0 0.0
        %640 = vmatprep.subr.mxu0 0.0
        %641 = vmatpush1.msra.mxu0 0.0
        %642 = vmatprep.subr.mxu0 0.0
        %643 = vmatpush1.msra.mxu0 0.0
        %644 = vmatprep.subr.mxu0 0.0
        %645 = vmatpush1.msra.mxu0 0.0
        %646 = vmatprep.subr.mxu0 0.0
        %647 = vmatpush1.msra.mxu0 0.0
        %648 = vmatprep.subr.mxu0 0.0
        %649 = vmatpush1.msra.mxu0 0.0
        %650 = vmatprep.subr.mxu0 0.0
        %651 = vmatpush1.msra.mxu0 0.0
        %652 = vmatprep.subr.mxu0 0.0
        %653 = vmatpush1.msra.mxu0 0.0
        %654 = vmatprep.subr.mxu0 0.0
        %655 = vmatpush1.msra.mxu0 0.0
        %656 = vmatprep.subr.mxu0 0.0
        %657 = vmatpush1.msra.mxu0 0.0
        %658 = vmatprep.subr.mxu0 0.0
        %659 = vmatpush1.msra.mxu0 0.0
        %660 = vmatprep.subr.mxu0 0.0
        %661 = vmatpush1.msra.mxu0 0.0
        %662 = vmatprep.subr.mxu0 0.0
        %663 = vmatpush1.msra.mxu0 0.0
        %664 = vmatprep.subr.mxu0 0.0
        %665 = vmatpush1.msra.mxu0 0.0
        %666 = vmatprep.subr.mxu0 0.0
        %667 = vmatpush1.msra.mxu0 0.0
        %668 = vmatprep.subr.mxu0 0.0
        %669 = vmatpush1.msra.mxu0 0.0
        %670 = vmatprep.subr.mxu0 0.0
        %671 = vmatpush1.msra.mxu0 0.0
        %672 = vmatprep.mubr.f32.mxu0 0.0
        %673 = vmatmul.mubr.f32.gmra.mrb[0].mxu0 %v606
        %v674 = vpop.f32.mrb[0].mxu0
        %v675 = vadd.f32 %v603, %v674
        %v676 = vpop.f32.mrb[0].mxu0
        %677 = vdwg.mxu0
        %v678 = vmax.f32 %v675, 0.0
        %v679 = vld [vmem:[%s7] sm:$0xf]
        %681 = vset.pattern.permute.xlu0 0
        %682 = vperm.xlu0 %681, %v679
        %v683 = vpop.permute.xlu0 %682
        %v685 = vadd.f32 %v678, %v683
        %686 = vst [vmem:[%s322] sm:$0xf] %v685
        %s687 = sand.u32 %s206, 1
        %s688 = scalar_lea.sflag [#allocation4], %s687
        %s689 = sand.u32 %s206, 1
        %s690 = smul.addr %s689, 4
        %s691 = scalar_lea.vmem [#allocation5], %s690
        // Predicated region
        $region57: #{tpu_custom_call.1} parent=51 // pred_check
          %p692 = pneg %p216
        $region58: #{tpu_custom_call.1} parent=51 // pred_check_branch
          %694 = sbr.rel (%p692) target = $region60
        $region59: #{tpu_custom_call.1} parent=51 // pred_region
          %s696 = ssub.s32 64, 64
          %697 = vsyncadd %s688, %s696
          %s698 = smul.addr %s25, 64
          %s699 = scalar_lea.hbm %s8, %s698
          %s701 = sshll.u32 %s691, 4
          %s702 = int_to_ptr.vmem [resolvable:$true] %s701
          %704 = dma.vmem_to_hbm [thread:$0]  %s702, 64, %s699, %s688
        $region60: #{tpu_custom_call.1} parent=51 // pred_fallthru
          _
      $region52: #{tpu_custom_call.1} parent=5 // pred_fallthru
        _
      %p705 = scmp.le.s32.totalorder 2, %s20
      // Predicated region
      $region61: #{tpu_custom_call.1} parent=5 // pred_check
        %p706 = pneg %p705
      $region62: #{tpu_custom_call.1} parent=5 // pred_check_branch
        %708 = sbr.rel (%p706) target = $region64
      $region63: #{tpu_custom_call.1} parent=5 // pred_region
        %s709 = ssub.s32 %s20, 2
        // Predicated region
        $region65: #{tpu_custom_call.1} parent=63 // pred_check
          %p710 = pneg %p222
        $region66: #{tpu_custom_call.1} parent=63 // pred_check_branch
          %712 = sbr.rel (%p710) target = $region68
        $region67: #{tpu_custom_call.1} parent=63 // pred_region
          %s713 = sand.u32 %s207, 1
          %s714 = scalar_lea.sflag [#allocation4], %s713
          %s715 = sand.u32 %s207, 1
          %s716 = smul.addr %s715, 4
          %s717 = scalar_lea.vmem [#allocation5], %s716
          %718 = dma.done %s714, 64
        $region68: #{tpu_custom_call.1} parent=63 // pred_fallthru
          _
      $region64: #{tpu_custom_call.1} parent=5 // pred_fallthru
        _
    $region6: #{tpu_custom_call.1} parent=1 // loop_footer
      %s24 = sadd.s32 1, %s20
    $region7: #{tpu_custom_call.1} parent=1 // loop_footer_branch
      %19 = sbr.rel target = $region3
    $region8: #{tpu_custom_call.1} parent=1 // loop_exit
      _
    %719 = vsyncpa [#allocation3], 1
    %s720 = scalar_lea.sflag [#allocation3], 1
    %721 = vsyncpa %s720, 1
    %722 = vsyncpa [#allocation4], 1
    %s723 = scalar_lea.sflag [#allocation4], 1
    %724 = vsyncpa %s723, 1

</llo_original>
